<compile_context>
chip_gen: v5e
topology: v5e:2x2
jax: 0.10.0
libtpu: 0.0.40
codegen_flags: <defaults>
</compile_context>

<pallas_src>
from functools import partial

import jax
import jax.numpy as jnp
from jax.experimental import pallas as pl
from jax.experimental.pallas import tpu as pltpu


def _round_up(x, m):
    return (x + m - 1) // m * m


def _pick_batch_tile(n, lh, *, lane_cap=4096):
    """Largest divisor of n keeping the folded lane width (bt*lh) under lane_cap,
    preferring >=2 grid steps (v7x has 2 TensorCores) once each step is at least
    one full vreg (128 lanes) wide; otherwise one big step (per-step overhead
    dominates tiny problems on v5e/v6e)."""
    divisors = [d for d in range(1, n + 1) if n % d == 0 and d * lh <= lane_cap]
    if not divisors:
        divisors = [1]
    split = [d for d in divisors if n // d >= 2 and d * lh >= 128]
    return max(split) if split else max(divisors)


def filterbank_kernel(x_ref, w_ref, b_ref, o_ref, *, n_shift, c_out_pad, lanes):
    # x_ref: (1, 2*C_in_pad, lanes)  -- even/odd polyphase input streams, batch folded
    #                                   into the lane axis (lanes % 128 == 0)
    # w_ref: (2*n_shift*c_out_pad, 2*C_in_pad) -- polyphase-stacked conv weights
    # b_ref: (c_out_pad, 1)                    -- bias
    # o_ref: (1, c_out_pad, lanes)             -- pooled output slab (lane-dense store)
    x = x_ref[0]
    # ONE MXU matmul per grid step computes every (tap, output-parity) combination at
    # once, already at the stride-2 pooled resolution.
    a = jnp.dot(w_ref[...], x, preferred_element_type=jnp.float32)

    def tap_sum(base):
        # Sum the per-shift blocks; shift j is a lane roll by -j (XLU).  Roll wrap and
        # cross-sample columns only land in positions the wrapper discards.
        acc = a[base * c_out_pad:(base + 1) * c_out_pad, :]
        for j in range(1, n_shift):
            blk = a[(base + j) * c_out_pad:(base + j + 1) * c_out_pad, :]
            acc = acc + pltpu.roll(blk, lanes - j, axis=1)      # == roll by -j
        return acc

    conv_even = tap_sum(0)           # conv output at even positions 2q
    conv_odd = tap_sum(n_shift)      # conv output at odd positions 2q+1
    # MaxPool2d((1, 2)); the per-channel bias commutes with max, added once after.
    pooled = jnp.maximum(conv_even, conv_odd) + b_ref[...]
    # Dropout() -> identity (eval/inference semantics);  ReLU.
    o_ref[0] = jnp.maximum(pooled, 0.0).astype(o_ref.dtype)


def filterbank_forward(x, w, b, *, batch_tile=None):
    """x: (N, C_in, L) float32 (PyTorch NCL); w: (C_out, C_in, fd); b: (C_out,).
    Returns (N, C_out, (L - fd + 1) // 2), matching FilterBank.forward (eval mode)."""
    N, C_in, L = x.shape
    C_out, c_in_w, fd = w.shape
    assert c_in_w == C_in, (c_in_w, C_in)
    L_out = L - fd + 1
    assert L_out >= 2, "input too short for Conv1d + MaxPool((1, 2))"
    L_pool = L_out // 2

    # ---- polyphase split: even / odd input positions become separate channels ------
    L_even = L + (L % 2)
    Lh = L_even // 2
    xp = jnp.pad(x.astype(jnp.float32), ((0, 0), (0, 0), (0, L_even - L)))
    x_eo = xp.reshape(N, C_in, Lh, 2)
    x_poly = jnp.concatenate([x_eo[..., 0], x_eo[..., 1]], axis=1)     # (N, 2*C_in, Lh)

    # ---- tiling ---------------------------------------------------------------------
    if batch_tile is None:
        batch_tile = _pick_batch_tile(N, Lh)
    assert N % batch_tile == 0, (N, batch_tile)
    G = N // batch_tile
    W_fold = batch_tile * Lh                        # folded lane width (batch * L/2)
    W_pad = _round_up(max(W_fold, 128), 128)        # dense DMAs & unmasked stores

    C2 = 2 * C_in
    C2p = _round_up(C2, 8)                          # contraction dim, sublane aligned
    Cop = _round_up(C_out, 8)                       # output rows, sublane aligned
    J = fd // 2 + 1                                 # number of distinct lane shifts

    # fold batch into the lane axis: x_fold[g, c, n*Lh + m] = x_poly[g*bt + n, c, m]
    x_fold = (x_poly.reshape(G, batch_tile, C2, Lh)
              .transpose(0, 2, 1, 3)
              .reshape(G, C2, W_fold))
    x_fold = jnp.pad(x_fold, ((0, 0), (0, C2p - C2), (0, W_pad - W_fold)))

    # ---- one-time polyphase weight stacking (tiny tensors) ---------------------------
    # Tap k contributing to output parity `branch` reads input position
    # 2q + branch + k = 2*(q + j) + phase  with  j = (k+branch)//2, phase = (k+branch)%2.
    # Block (branch, j) of w_stack therefore holds w[:, :, k] in the `phase` channel
    # columns; the kernel rolls that block's matmul result by -j and accumulates.
    w_f = w.astype(jnp.float32)
    w_stack = jnp.zeros((2 * J * Cop, C2p), jnp.float32)
    for k in range(fd):
        wk = w_f[:, :, k]                                              # (C_out, C_in)
        for branch in (0, 1):                                          # even / odd outputs
            j, phase = (k + branch) // 2, (k + branch) % 2
            blk = branch * J + j
            w_stack = w_stack.at[blk * Cop:blk * Cop + C_out,
                                 phase * C_in:phase * C_in + C_in].set(wk)
    b_pad = jnp.zeros((Cop, 1), jnp.float32).at[:C_out, 0].set(b.astype(jnp.float32))

    kernel = partial(filterbank_kernel, n_shift=J, c_out_pad=Cop, lanes=W_pad)

    out = pl.pallas_call(
        kernel,
        out_shape=jax.ShapeDtypeStruct((G, Cop, W_pad), x.dtype),
        grid=(G,),
        in_specs=[
            pl.BlockSpec((1, C2p, W_pad), lambda i: (i, 0, 0)),        # folded activations
            pl.BlockSpec((2 * J * Cop, C2p), lambda i: (0, 0)),        # stacked weights
            pl.BlockSpec((Cop, 1), lambda i: (0, 0)),                  # bias
        ],
        out_specs=pl.BlockSpec((1, Cop, W_pad), lambda i: (i, 0, 0)),
        compiler_params=pltpu.CompilerParams(
            dimension_semantics=("parallel",)),      # batch tiles are independent
    )(x_fold, w_stack, b_pad)

    # Layout plumbing back to PyTorch NCL (pure XLA reshapes/slices outside the kernel).
    out = out[:, :, :W_fold].reshape(G, Cop, batch_tile, Lh)
    out = out.transpose(0, 2, 1, 3).reshape(N, Cop, Lh)
    return out[:, :C_out, :L_pool]


def filterbank_reference(x, w, b):
    """Pure-JAX reference matching PyTorch semantics (eval mode)."""
    N, C_in, L = x.shape
    C_out, _, fd = w.shape
    L_out = L - fd + 1
    y = jnp.zeros((N, C_out, L_out), jnp.float32) + b[None, :, None]
    for k in range(fd):
        y = y + jnp.einsum("ncl,oc->nol", x[:, :, k:k + L_out], w[:, :, k])
    L_pool = L_out // 2
    y = y[:, :, :2 * L_pool].reshape(N, C_out, L_pool, 2).max(axis=-1)
    return jnp.maximum(y, 0.0)


if __name__ == "__main__":
    # Small shapes implied by the module: x is (batch, channels_in, length).
    N, C_in, C_out, L, fd = 2, 4, 8, 16, 3

    key = jax.random.PRNGKey(0)
    kx, kw, kb = jax.random.split(key, 3)
    x = jax.random.normal(kx, (N, C_in, L), dtype=jnp.float32)
    # Deterministic synthetic parameters (Conv1d weight: (C_out, C_in, fd), bias: (C_out,)).
    fan_in = C_in * fd
    w = jax.random.uniform(kw, (C_out, C_in, fd), dtype=jnp.float32,
                           minval=-1.0, maxval=1.0) / jnp.sqrt(fan_in)
    b = jax.random.uniform(kb, (C_out,), dtype=jnp.float32,
                           minval=-1.0, maxval=1.0) / jnp.sqrt(fan_in)

    out = jax.block_until_ready(filterbank_forward(x, w, b))
    ref = filterbank_reference(x, w, b)

    assert out.shape == (N, C_out, (L - fd + 1) // 2), out.shape
    assert jnp.allclose(out, ref, rtol=1e-5, atol=1e-5), float(jnp.max(jnp.abs(out - ref)))

    print("KERNEL_OK")
</pallas_src>

<mosaic_0001>
module attributes {stable_mosaic.version = 11 : i64} {
  func.func @filterbank_kernel(%arg0: i32, %arg1: memref<1x8x128xf32, #tpu.memory_space<vmem>>, %arg2: memref<32x8xf32, #tpu.memory_space<vmem>>, %arg3: memref<8x1xf32, #tpu.memory_space<vmem>>, %arg4: memref<1x8x128xf32, #tpu.memory_space<vmem>>) attributes {dimension_semantics = [#tpu.dimension_semantics<parallel>], iteration_bounds = array<i64: 1>, scalar_prefetch = 0 : i64, scratch_operands = 0 : i64, tpu.core_type = #tpu.core_type<tc>, window_params = [{transform_indices = @transform_0, window_bounds = array<i64: 1, 8, 128>}, {pipeline_mode = #tpu.pipeline_mode<synchronous>, transform_indices = @transform_1, window_bounds = array<i64: 32, 8>}, {pipeline_mode = #tpu.pipeline_mode<synchronous>, transform_indices = @transform_2, window_bounds = array<i64: 8, 1>}, {transform_indices = @transform_3, window_bounds = array<i64: 1, 8, 128>}]} {
    %c0 = arith.constant 0 : index
    %c0_0 = arith.constant 0 : index
    %c0_1 = arith.constant 0 : index
    %0 = vector.load %arg1[%c0, %c0_0, %c0_1] : memref<1x8x128xf32, #tpu.memory_space<vmem>>, vector<1x8x128xf32>
    %1 = vector.shape_cast %0 : vector<1x8x128xf32> to vector<8x128xf32>
    %c0_2 = arith.constant 0 : index
    %c0_3 = arith.constant 0 : index
    %2 = vector.load %arg2[%c0_2, %c0_3] : memref<32x8xf32, #tpu.memory_space<vmem>>, vector<32x8xf32>
    %cst = arith.constant dense<0.000000e+00> : vector<32x128xf32>
    %3 = tpu.matmul %2, %1, %cst {dimension_numbers = #tpu.dot_dimension_numbers<[1], [0], [0], [1], [0, 0, 1, 1], [], []>} : vector<32x8xf32>, vector<8x128xf32>, vector<32x128xf32> -> vector<32x128xf32>
    %4 = vector.extract_strided_slice %3 {offsets = [0, 0], sizes = [8, 128], strides = [1, 1]} : vector<32x128xf32> to vector<8x128xf32>
    %5 = vector.extract_strided_slice %3 {offsets = [8, 0], sizes = [8, 128], strides = [1, 1]} : vector<32x128xf32> to vector<8x128xf32>
    %c127_i32 = arith.constant 127 : i32
    %6 = tpu.dynamic_rotate %5 by %c127_i32 dim 1 : vector<8x128xf32>, i32 -> vector<8x128xf32>
    %7 = arith.addf %4, %6 : vector<8x128xf32>
    %8 = vector.extract_strided_slice %3 {offsets = [16, 0], sizes = [8, 128], strides = [1, 1]} : vector<32x128xf32> to vector<8x128xf32>
    %9 = vector.extract_strided_slice %3 {offsets = [24, 0], sizes = [8, 128], strides = [1, 1]} : vector<32x128xf32> to vector<8x128xf32>
    %c127_i32_4 = arith.constant 127 : i32
    %10 = tpu.dynamic_rotate %9 by %c127_i32_4 dim 1 : vector<8x128xf32>, i32 -> vector<8x128xf32>
    %11 = arith.addf %8, %10 : vector<8x128xf32>
    %12 = arith.maximumf %7, %11 : vector<8x128xf32>
    %c0_5 = arith.constant 0 : index
    %c0_6 = arith.constant 0 : index
    %13 = vector.load %arg3[%c0_5, %c0_6] : memref<8x1xf32, #tpu.memory_space<vmem>>, vector<8x1xf32>
    %14 = vector.broadcast %13 : vector<8x1xf32> to vector<8x128xf32>
    %15 = arith.addf %12, %14 : vector<8x128xf32>
    %cst_7 = arith.constant 0.000000e+00 : f32
    %16 = vector.broadcast %cst_7 : f32 to vector<8x128xf32>
    %17 = arith.maximumf %15, %16 : vector<8x128xf32>
    %c0_8 = arith.constant 0 : index
    %c0_9 = arith.constant 0 : index
    %c0_10 = arith.constant 0 : index
    %18 = vector.load %arg4[%c0_8, %c0_9, %c0_10] : memref<1x8x128xf32, #tpu.memory_space<vmem>>, vector<1x8x128xf32>
    %19 = vector.shape_cast %18 : vector<1x8x128xf32> to vector<8x128xf32>
    %20 = vector.shape_cast %17 : vector<8x128xf32> to vector<1x8x128xf32>
    tpu.vector_store %arg4[%c0_8, %c0_9, %c0_10], %20 {strides = array<i32>} : memref<1x8x128xf32, #tpu.memory_space<vmem>>, vector<1x8x128xf32>,
    return
  }
  func.func @transform_0(%arg0: i32) -> (i32, i32, i32) {
    %c0_i32 = arith.constant 0 : i32
    %c0_i32_0 = arith.constant 0 : i32
    %c0_i32_1 = arith.constant 0 : i32
    return %arg0, %c0_i32, %c0_i32_0 : i32, i32, i32
  }
  func.func @transform_1(%arg0: i32) -> (i32, i32) {
    %c0_i32 = arith.constant 0 : i32
    %c0_i32_0 = arith.constant 0 : i32
    %c0_i32_1 = arith.constant 0 : i32
    return %c0_i32, %c0_i32_0 : i32, i32
  }
  func.func @transform_2(%arg0: i32) -> (i32, i32) {
    %c0_i32 = arith.constant 0 : i32
    %c0_i32_0 = arith.constant 0 : i32
    %c0_i32_1 = arith.constant 0 : i32
    return %c0_i32, %c0_i32_0 : i32, i32
  }
  func.func @transform_3(%arg0: i32) -> (i32, i32, i32) {
    %c0_i32 = arith.constant 0 : i32
    %c0_i32_0 = arith.constant 0 : i32
    %c0_i32_1 = arith.constant 0 : i32
    return %arg0, %c0_i32, %c0_i32_0 : i32, i32, i32
  }
}

</mosaic_0001>

<llo_original>
// kernel: tpu_custom_call.1
$region0: #{tpu_custom_call.1}
  #allocation0 [shape = 'u32[]', space=smem, size = 0x4, offset = 0x4, fixed_abs, tag = 'smem constant byte address 0x4 - core index']
  #allocation1 [shape = 'u32[72,128]{1,0:T(1,128)}', space=vmem, size = 0x9000, scoped, tag = 'internal scratch']
  %s0 = inlined_call_operand.vmem [shape: f32[1,8,128], index: 0, kind: input, shape index: {}]
  %s1 = inlined_call_operand.vmem [shape: f32[32,8], index: 1, kind: input, shape index: {}]
  %s2 = inlined_call_operand.vmem [shape: f32[8,1], index: 2, kind: input, shape index: {}]
  %s3 = inlined_call_operand.hbm [shape: f32[1,8,128], index: 3, kind: output, shape index: {}]
  %s4 = sld [smem:[#allocation0]]
  $region22: #{tpu_custom_call.1} parent=0
    _
  %s6 = ssub.s32 1, %s4
  %s7 = scalar_select 0, %s6, %s4
  $region1: #{tpu_custom_call.1} parent=0
    #allocation2 [shape = 'u8[4096]{0}', space=vmem, size = 0x1000, scoped, tag = 'output window, operand 0, single buffered']
    #allocation3 [shape = 's32[1]{0}', space=sflag, size = 0x4, scoped, tag = 'scoped memory for tpu_custom_call.1']
    %8 = vsyncpa [#allocation3], 0
    // Predicated region
    $region2: #{tpu_custom_call.1} parent=1 // pred_check
      _
    $region3: #{tpu_custom_call.1} parent=1 // pred_check_branch
      %10 = sbr.rel (0) target = $region5
    $region4: #{tpu_custom_call.1} parent=1 // pred_region
      _
    $region5: #{tpu_custom_call.1} parent=1 // pred_fallthru
      _
    // Predicated region
    $region6: #{tpu_custom_call.1} parent=1 // pred_check
      _
    $region7: #{tpu_custom_call.1} parent=1 // pred_check_branch
      %12 = sbr.rel (0) target = $region9
    $region8: #{tpu_custom_call.1} parent=1 // pred_region
      _
    $region9: #{tpu_custom_call.1} parent=1 // pred_fallthru
      _
    // Predicated region
    $region10: #{tpu_custom_call.1} parent=1 // pred_check
      _
    $region11: #{tpu_custom_call.1} parent=1 // pred_check_branch
      %14 = sbr.rel (0) target = $region13
    $region12: #{tpu_custom_call.1} parent=1 // pred_region
      _
    $region13: #{tpu_custom_call.1} parent=1 // pred_fallthru
      _
    %v15 = vld [vmem:[%s0] sm:$0xff]
    %v16 = vld [vmem:[%s1] sm:$0xff]
    %v17 = vld [vmem:[%s1 + $0x8] sm:$0xff]
    %v18 = vld [vmem:[%s1 + $0x10] sm:$0xff]
    %v19 = vld [vmem:[%s1 + $0x18] sm:$0xff]
    %vm20 = vcmask 64512
    %v22 = vsel %vm20, %v16, 0
    %v25 = vsel %vm20, %v17, 0
    %v28 = vsel %vm20, %v18, 0
    %v31 = vsel %vm20, %v19, 0
    %33 = vmatpush.msra.mxu0 0.0
    %34 = vmatpush.msra.mxu0 0.0
    %35 = vmatpush.msra.mxu0 0.0
    %36 = vmatpush.msra.mxu0 0.0
    %37 = vmatpush.msra.mxu0 0.0
    %38 = vmatpush.msra.mxu0 0.0
    %39 = vmatpush.msra.mxu0 0.0
    %40 = vmatpush.msra.mxu0 0.0
    %41 = vmatpush.msra.mxu0 0.0
    %42 = vmatpush.msra.mxu0 0.0
    %43 = vmatpush.msra.mxu0 0.0
    %44 = vmatpush.msra.mxu0 0.0
    %45 = vmatpush.msra.mxu0 0.0
    %46 = vmatpush.msra.mxu0 0.0
    %47 = vmatpush.msra.mxu0 0.0
    %48 = vmatpush.msra.mxu0 %v15
    %49 = vmatmul.f32.gmra.mxu0 %v22
    %v50 = vpop.f32.mrf.mxu0
    %v51 = vadd.f32 0.0, %v50
    %52 = vmatmul.f32.gmra.mxu0 %v25
    %v53 = vpop.f32.mrf.mxu0
    %v54 = vadd.f32 0.0, %v53
    %55 = vmatmul.f32.gmra.mxu0 %v28
    %v56 = vpop.f32.mrf.mxu0
    %v57 = vadd.f32 0.0, %v56
    %58 = vmatmul.f32.gmra.mxu0 %v31
    %v59 = vpop.f32.mrf.mxu0
    %v60 = vadd.f32 0.0, %v59
    %61 = vdwg.mxu0
    %62 = vrot.lane.b32.xlu0 %v54, 127
    %v63 = vpop.permute.xlu0 %62
    %v64 = vadd.f32 %v51, %v63
    %65 = vrot.lane.b32.xlu0 %v60, 127
    %v66 = vpop.permute.xlu0 %65
    %v67 = vadd.f32 %v57, %v66
    %v68 = vmax.f32 %v64, %v67
    %v69 = vld [vmem:[%s2] sm:$0xff]
    %71 = vset.pattern.permute.xlu0 0
    %72 = vperm.xlu0 %71, %v69
    %v73 = vpop.permute.xlu0 %72
    %v75 = vadd.f32 %v68, %v73
    %v76 = vmax.f32 %v75, 0.0
    %77 = vst [vmem:[#allocation2] sm:$0xff] %v76
    // Predicated region
    $region14: #{tpu_custom_call.1} parent=1 // pred_check
      _
    $region15: #{tpu_custom_call.1} parent=1 // pred_check_branch
      %79 = sbr.rel (0) target = $region17
    $region16: #{tpu_custom_call.1} parent=1 // pred_region
      %81 = vsyncadd [#allocation3], 0
      %s83 = sshll.u32 [#allocation2], 4
      %s84 = int_to_ptr.vmem [resolvable:$true] %s83
      %s85 = sshll.u32 %s3, 4
      %s86 = int_to_ptr.hbm [resolvable:$true] %s85
      %88 = dma.vmem_to_hbm [thread:$0]  %s84, 128, %s86, [#allocation3]
    $region17: #{tpu_custom_call.1} parent=1 // pred_fallthru
      _
    // Predicated region
    $region18: #{tpu_custom_call.1} parent=1 // pred_check
      _
    $region19: #{tpu_custom_call.1} parent=1 // pred_check_branch
      %90 = sbr.rel (0) target = $region21
    $region20: #{tpu_custom_call.1} parent=1 // pred_region
      %92 = dma.done [#allocation3], 128
    $region21: #{tpu_custom_call.1} parent=1 // pred_fallthru
      _
    %93 = vsyncpa [#allocation3], 1

</llo_original>
